<compile_context>
chip_gen: v5e
topology: v5e:2x2
jax: 0.10.0
libtpu: 0.0.40
codegen_flags: <defaults>
</compile_context>

<pallas_src>
import jax
import jax.numpy as jnp
from jax.experimental import pallas as pl
from jax.experimental.pallas import tpu as pltpu


def _round_up(n, m):
    return ((n + m - 1) // m) * m


def _mlp_kernel(x_ref, z_ref,
                w1x_ref, w1z_ref, b1_ref,
                w2_ref, b2_ref,
                w3_ref, b3_ref,
                w4_ref, b4_ref,
                o_ref):
    """Fused (Linear+ReLU) x3 then Linear->1 for one batch tile.

    Layer 1 is split over the x / z halves of the input features (no concat,
    no extra HBM round-trip).  MXU matmuls run in the weight dtype (bf16 by
    default) with f32 accumulation; bias-add / ReLU stay f32 (v5e's VPU has no
    bf16).  The final 1-wide layer is computed as w4 (1, hp) @ h^T -> (1, tb)
    so the store is a lane-dense row instead of a masked (tb, 1) column.
    """
    cdt = w1x_ref.dtype  # MXU compute dtype (f32 or bf16); accumulation is f32

    h = (jnp.dot(x_ref[...], w1x_ref[...], preferred_element_type=jnp.float32)
         + jnp.dot(z_ref[...], w1z_ref[...], preferred_element_type=jnp.float32)
         + b1_ref[...])
    h = jnp.maximum(h, 0.0)

    h = jnp.dot(h.astype(cdt), w2_ref[...],
                preferred_element_type=jnp.float32) + b2_ref[...]
    h = jnp.maximum(h, 0.0)

    h = jnp.dot(h.astype(cdt), w3_ref[...],
                preferred_element_type=jnp.float32) + b3_ref[...]
    h = jnp.maximum(h, 0.0)

    # Final layer as an M=1 matmul: (1, hp) x (tb, hp)^T -> (1, tb). Negligible
    # MXU cost, and the result is already in the lane-dense row layout we store.
    out = jax.lax.dot_general(
        w4_ref[...], h.astype(cdt),
        dimension_numbers=(((1,), (1,)), ((), ())),
        preferred_element_type=jnp.float32) + b4_ref[...]
    o_ref[...] = out.reshape(o_ref.shape).astype(o_ref.dtype)


def prepare_params(params, x_size, *, use_bf16=True, lane=128):
    """One-time transform of PyTorch-style params into kernel layout.

    params: dict with wK of shape (in, out) == PyTorch weight.T, bK (1, out).
    Splits w1 into its x / z halves, zero-pads the hidden width to a multiple
    of `lane` (exact no-op: padded units have zero weight/bias, ReLU(0)=0) and
    stores w4 as a (1, hp) row.  With use_bf16=True (default) all MXU weight
    operands are bf16 (this is a weights+activations bf16 path: the wrapper
    also streams x/z in bf16); biases stay f32.
    """
    n_hidden = params["w1"].shape[1]
    hp = _round_up(n_hidden, lane)
    pad_h = hp - n_hidden

    def pad_cols(w):
        return jnp.pad(w, ((0, 0), (0, pad_h)))

    def pad_both(w):
        return jnp.pad(w, ((0, pad_h), (0, pad_h)))

    w1 = params["w1"].astype(jnp.float32)
    prep = {
        "w1x": pad_cols(w1[:x_size]),
        "w1z": pad_cols(w1[x_size:]),
        "b1": pad_cols(params["b1"].astype(jnp.float32)),
        "w2": pad_both(params["w2"].astype(jnp.float32)),
        "b2": pad_cols(params["b2"].astype(jnp.float32)),
        "w3": pad_both(params["w3"].astype(jnp.float32)),
        "b3": pad_cols(params["b3"].astype(jnp.float32)),
        "w4": jnp.pad(params["w4"].astype(jnp.float32).T, ((0, 0), (0, pad_h))),
        "b4": params["b4"].astype(jnp.float32).reshape(1, 1),
    }
    if use_bf16:
        for k in ("w1x", "w1z", "w2", "w3", "w4"):  # MXU operands only
            prep[k] = prep[k].astype(jnp.bfloat16)
    return prep


def _default_min_batch_tiles():
    # v7x has 2 TensorCores sharing "parallel" grid axes -> want >=2 batch tiles
    # when B allows it. v5e/v6e (1 TC) prefer one big tile (fewer ~0.35us steps).
    try:
        if "v7" in jax.devices()[0].device_kind.lower():
            return 2
    except Exception:
        pass
    return 1


def _choose_batch_tiling(B, batch_tile, min_tiles):
    """Balanced tiles: avoids the up-to-2x padding of round_up(B, batch_tile)."""
    want = max(pl.cdiv(B, batch_tile), min_tiles, 1)
    want = max(min(want, pl.cdiv(B, 8)), 1)     # never emit an all-padding tile
    tb = _round_up(pl.cdiv(B, want), 8)
    n_tiles = pl.cdiv(B, tb)
    return tb, n_tiles


def mi_estimation_forward(x, z, prep, *, batch_tile=256, activation_buffers=2,
                          min_batch_tiles=None):
    """Forward pass matching the PyTorch module.

    x: (B, C, H, W) or (B, x_size); z: (B, ...) flattened to (B, z_size).
    prep: output of prepare_params().  Returns (B, 1) float32.
    """
    B = x.shape[0]
    act_dtype = prep["w1x"].dtype               # stream activations in MXU dtype
    x_flat = x.reshape(B, -1).astype(act_dtype)
    z_flat = z.reshape(B, -1).astype(act_dtype)
    x_size = x_flat.shape[1]
    z_size = z_flat.shape[1]
    hp = prep["w2"].shape[0]

    if min_batch_tiles is None:
        min_batch_tiles = _default_min_batch_tiles()
    tb, n_tiles = _choose_batch_tiling(B, batch_tile, min_batch_tiles)
    bp = n_tiles * tb
    if bp != B:
        x_flat = jnp.pad(x_flat, ((0, bp - B), (0, 0)))
        z_flat = jnp.pad(z_flat, ((0, bp - B), (0, 0)))

    # Explicit VMEM budget: single-buffered resident weights (x2 to cover the
    # no-pipeline_mode fallback), pipelined activation tiles, generous room for
    # the f32 inter-layer activation + its bf16 cast copy, plus headroom.
    weight_bytes = sum(int(v.size) * v.dtype.itemsize for v in prep.values())
    act_bytes = max(2, activation_buffers) * tb * (x_size + z_size) \
        * jnp.dtype(act_dtype).itemsize
    h_bytes = 4 * tb * hp * 4
    out_bytes = 2 * tb * 4
    vmem_limit = int(min(max(2 * weight_bytes + act_bytes + h_bytes + out_bytes
                             + (4 << 20), 32 << 20), 128 << 20))

    def run(weight_buffers, act_buffers):
        def spec(shape, index_map, buffers):
            if buffers is not None and hasattr(pl, "Buffered"):
                try:
                    return pl.BlockSpec(shape, index_map,
                                        pipeline_mode=pl.Buffered(buffers))
                except TypeError:
                    pass
            return pl.BlockSpec(shape, index_map)

        batched = lambda shape: spec(shape, lambda i: (i, 0), act_buffers)
        resident = lambda shape: spec(shape, lambda i: (0, 0), weight_buffers)

        return pl.pallas_call(
            _mlp_kernel,
            out_shape=jax.ShapeDtypeStruct((n_tiles, 1, tb), jnp.float32),
            grid_spec=pltpu.PrefetchScalarGridSpec(
                num_scalar_prefetch=0,
                grid=(n_tiles,),
                in_specs=[
                    batched((tb, x_size)),
                    batched((tb, z_size)),
                    resident((x_size, hp)), resident((z_size, hp)), resident((1, hp)),
                    resident((hp, hp)), resident((1, hp)),
                    resident((hp, hp)), resident((1, hp)),
                    resident((1, hp)), resident((1, 1)),
                ],
                # Lane-dense (1, tb) row store per tile (no masked column stores).
                out_specs=pl.BlockSpec((1, 1, tb), lambda i: (i, 0, 0)),
            ),
            compiler_params=pltpu.CompilerParams(
                dimension_semantics=("parallel",),
                vmem_limit_bytes=vmem_limit),
        )(x_flat, z_flat,
          prep["w1x"], prep["w1z"], prep["b1"],
          prep["w2"], prep["b2"],
          prep["w3"], prep["b3"],
          prep["w4"], prep["b4"])

    try:
        out = run(1, activation_buffers)      # single-buffer resident weights
    except Exception:
        # Older Pallas without per-BlockSpec pipeline_mode / Buffered(1):
        # default double-buffering everywhere (correct, just more VMEM).
        out = run(None, None)

    return out.reshape(-1)[:B].reshape(B, 1)


def init_params(key, x_size, z_size, n_hidden):
    """Deterministic init mimicking nn.Linear default (U[-1/sqrt(fan_in), ...])."""
    dims = [(x_size + z_size, n_hidden),
            (n_hidden, n_hidden),
            (n_hidden, n_hidden),
            (n_hidden, 1)]
    params = {}
    for i, (fan_in, fan_out) in enumerate(dims, start=1):
        key, kw, kb = jax.random.split(key, 3)
        bound = 1.0 / jnp.sqrt(fan_in)
        params[f"w{i}"] = jax.random.uniform(          # (in, out) == torch weight.T
            kw, (fan_in, fan_out), jnp.float32, -bound, bound)
        params[f"b{i}"] = jax.random.uniform(
            kb, (1, fan_out), jnp.float32, -bound, bound)
    return params


def reference_forward(x, z, params):
    """Plain-JAX reference (mirrors the PyTorch module exactly, unpadded)."""
    B = x.shape[0]
    h = jnp.concatenate([x.reshape(B, -1), z.reshape(B, -1)], axis=-1)
    h = jnp.maximum(h @ params["w1"] + params["b1"], 0.0)
    h = jnp.maximum(h @ params["w2"] + params["b2"], 0.0)
    h = jnp.maximum(h @ params["w3"] + params["b3"], 0.0)
    return h @ params["w4"] + params["b4"]


if __name__ == "__main__":
    key = jax.random.PRNGKey(0)

    # Small shapes consistent with the module: x is an image-like NCHW tensor,
    # z is a latent vector.
    B, C, H, W = 8, 4, 4, 4          # x_size = C*H*W = 64
    z_size = 16
    n_hidden = 32
    x_size = C * H * W

    key, kx, kz, kp = jax.random.split(key, 4)
    x = jax.random.normal(kx, (B, C, H, W), jnp.float32)
    z = jax.random.normal(kz, (B, z_size), jnp.float32)
    params = init_params(kp, x_size, z_size, n_hidden)

    ref = reference_forward(x, z, params)

    # Exact-numerics f32 path (matches the PyTorch module).
    prep_f32 = prepare_params(params, x_size, use_bf16=False)
    out_f32 = jax.block_until_ready(mi_estimation_forward(x, z, prep_f32))
    assert out_f32.shape == (B, 1), out_f32.shape
    assert jnp.allclose(out_f32, ref, atol=2e-4, rtol=2e-4), (
        f"f32 max abs err {jnp.max(jnp.abs(out_f32 - ref))}")

    # Default fast path: bf16 weights + bf16-streamed activations, f32 accum.
    prep_bf16 = prepare_params(params, x_size)        # use_bf16=True default
    out_bf16 = jax.block_until_ready(mi_estimation_forward(x, z, prep_bf16))
    assert out_bf16.shape == (B, 1), out_bf16.shape
    assert bool(jnp.all(jnp.isfinite(out_bf16)))
    assert float(jnp.max(jnp.abs(out_bf16 - ref))) < 0.3, (
        f"bf16 max abs err {jnp.max(jnp.abs(out_bf16 - ref))}")

    # Multi-tile path: uneven batch with a small tile exercises the balanced
    # tiling and the lane-dense (n_tiles, 1, tb) output with n_tiles > 1.
    B2 = 40
    key, kx2, kz2 = jax.random.split(key, 3)
    x2 = jax.random.normal(kx2, (B2, C, H, W), jnp.float32)
    z2 = jax.random.normal(kz2, (B2, z_size), jnp.float32)
    ref2 = reference_forward(x2, z2, params)
    out2 = jax.block_until_ready(
        mi_estimation_forward(x2, z2, prep_f32, batch_tile=16))
    assert out2.shape == (B2, 1), out2.shape
    assert jnp.allclose(out2, ref2, atol=2e-4, rtol=2e-4), (
        f"multi-tile max abs err {jnp.max(jnp.abs(out2 - ref2))}")

    print("KERNEL_OK")
</pallas_src>

<mosaic_0001>
module attributes {stable_mosaic.version = 11 : i64} {
  func.func @_mlp_kernel(%arg0: i32, %arg1: memref<8x64xf32, #tpu.memory_space<vmem>>, %arg2: memref<8x16xf32, #tpu.memory_space<vmem>>, %arg3: memref<64x128xf32, #tpu.memory_space<vmem>>, %arg4: memref<16x128xf32, #tpu.memory_space<vmem>>, %arg5: memref<1x128xf32, #tpu.memory_space<vmem>>, %arg6: memref<128x128xf32, #tpu.memory_space<vmem>>, %arg7: memref<1x128xf32, #tpu.memory_space<vmem>>, %arg8: memref<128x128xf32, #tpu.memory_space<vmem>>, %arg9: memref<1x128xf32, #tpu.memory_space<vmem>>, %arg10: memref<1x128xf32, #tpu.memory_space<vmem>>, %arg11: memref<1x1xf32, #tpu.memory_space<vmem>>, %arg12: memref<1x1x8xf32, #tpu.memory_space<vmem>>) attributes {dimension_semantics = [#tpu.dimension_semantics<parallel>], iteration_bounds = array<i64: 1>, scalar_prefetch = 0 : i64, scratch_operands = 0 : i64, tpu.core_type = #tpu.core_type<tc>, window_params = [{pipeline_mode = #tpu.pipeline_mode<double_buffered>, transform_indices = @transform_0, window_bounds = array<i64: 8, 64>}, {pipeline_mode = #tpu.pipeline_mode<double_buffered>, transform_indices = @transform_1, window_bounds = array<i64: 8, 16>}, {pipeline_mode = #tpu.pipeline_mode<synchronous>, transform_indices = @transform_2, window_bounds = array<i64: 64, 128>}, {pipeline_mode = #tpu.pipeline_mode<synchronous>, transform_indices = @transform_3, window_bounds = array<i64: 16, 128>}, {pipeline_mode = #tpu.pipeline_mode<synchronous>, transform_indices = @transform_4, window_bounds = array<i64: 1, 128>}, {pipeline_mode = #tpu.pipeline_mode<synchronous>, transform_indices = @transform_5, window_bounds = array<i64: 128, 128>}, {pipeline_mode = #tpu.pipeline_mode<synchronous>, transform_indices = @transform_6, window_bounds = array<i64: 1, 128>}, {pipeline_mode = #tpu.pipeline_mode<synchronous>, transform_indices = @transform_7, window_bounds = array<i64: 128, 128>}, {pipeline_mode = #tpu.pipeline_mode<synchronous>, transform_indices = @transform_8, window_bounds = array<i64: 1, 128>}, {pipeline_mode = #tpu.pipeline_mode<synchronous>, transform_indices = @transform_9, window_bounds = array<i64: 1, 128>}, {pipeline_mode = #tpu.pipeline_mode<synchronous>, transform_indices = @transform_10, window_bounds = array<i64: 1, 1>}, {transform_indices = @transform_11, window_bounds = array<i64: 1, 1, 8>}]} {
    %c0 = arith.constant 0 : index
    %c0_0 = arith.constant 0 : index
    %0 = vector.load %arg1[%c0, %c0_0] : memref<8x64xf32, #tpu.memory_space<vmem>>, vector<8x64xf32>
    %c0_1 = arith.constant 0 : index
    %c0_2 = arith.constant 0 : index
    %1 = vector.load %arg3[%c0_1, %c0_2] : memref<64x128xf32, #tpu.memory_space<vmem>>, vector<64x128xf32>
    %cst = arith.constant dense<0.000000e+00> : vector<8x128xf32>
    %2 = tpu.matmul %0, %1, %cst {dimension_numbers = #tpu.dot_dimension_numbers<[1], [0], [0], [1], [0, 0, 1, 1], [], []>} : vector<8x64xf32>, vector<64x128xf32>, vector<8x128xf32> -> vector<8x128xf32>
    %c0_3 = arith.constant 0 : index
    %c0_4 = arith.constant 0 : index
    %3 = vector.load %arg2[%c0_3, %c0_4] : memref<8x16xf32, #tpu.memory_space<vmem>>, vector<8x16xf32>
    %c0_5 = arith.constant 0 : index
    %c0_6 = arith.constant 0 : index
    %4 = vector.load %arg4[%c0_5, %c0_6] : memref<16x128xf32, #tpu.memory_space<vmem>>, vector<16x128xf32>
    %cst_7 = arith.constant dense<0.000000e+00> : vector<8x128xf32>
    %5 = tpu.matmul %3, %4, %cst_7 {dimension_numbers = #tpu.dot_dimension_numbers<[1], [0], [0], [1], [0, 0, 1, 1], [], []>} : vector<8x16xf32>, vector<16x128xf32>, vector<8x128xf32> -> vector<8x128xf32>
    %6 = arith.addf %2, %5 : vector<8x128xf32>
    %c0_8 = arith.constant 0 : index
    %c0_9 = arith.constant 0 : index
    %7 = vector.load %arg5[%c0_8, %c0_9] : memref<1x128xf32, #tpu.memory_space<vmem>>, vector<1x128xf32>
    %8 = vector.broadcast %7 : vector<1x128xf32> to vector<8x128xf32>
    %9 = arith.addf %6, %8 : vector<8x128xf32>
    %cst_10 = arith.constant 0.000000e+00 : f32
    %10 = vector.broadcast %cst_10 : f32 to vector<8x128xf32>
    %11 = arith.maximumf %9, %10 : vector<8x128xf32>
    %c0_11 = arith.constant 0 : index
    %c0_12 = arith.constant 0 : index
    %12 = vector.load %arg6[%c0_11, %c0_12] : memref<128x128xf32, #tpu.memory_space<vmem>>, vector<128x128xf32>
    %cst_13 = arith.constant dense<0.000000e+00> : vector<8x128xf32>
    %13 = tpu.matmul %11, %12, %cst_13 {dimension_numbers = #tpu.dot_dimension_numbers<[1], [0], [0], [1], [0, 0, 1, 1], [], []>} : vector<8x128xf32>, vector<128x128xf32>, vector<8x128xf32> -> vector<8x128xf32>
    %c0_14 = arith.constant 0 : index
    %c0_15 = arith.constant 0 : index
    %14 = vector.load %arg7[%c0_14, %c0_15] : memref<1x128xf32, #tpu.memory_space<vmem>>, vector<1x128xf32>
    %15 = vector.broadcast %14 : vector<1x128xf32> to vector<8x128xf32>
    %16 = arith.addf %13, %15 : vector<8x128xf32>
    %cst_16 = arith.constant 0.000000e+00 : f32
    %17 = vector.broadcast %cst_16 : f32 to vector<8x128xf32>
    %18 = arith.maximumf %16, %17 : vector<8x128xf32>
    %c0_17 = arith.constant 0 : index
    %c0_18 = arith.constant 0 : index
    %19 = vector.load %arg8[%c0_17, %c0_18] : memref<128x128xf32, #tpu.memory_space<vmem>>, vector<128x128xf32>
    %cst_19 = arith.constant dense<0.000000e+00> : vector<8x128xf32>
    %20 = tpu.matmul %18, %19, %cst_19 {dimension_numbers = #tpu.dot_dimension_numbers<[1], [0], [0], [1], [0, 0, 1, 1], [], []>} : vector<8x128xf32>, vector<128x128xf32>, vector<8x128xf32> -> vector<8x128xf32>
    %c0_20 = arith.constant 0 : index
    %c0_21 = arith.constant 0 : index
    %21 = vector.load %arg9[%c0_20, %c0_21] : memref<1x128xf32, #tpu.memory_space<vmem>>, vector<1x128xf32>
    %22 = vector.broadcast %21 : vector<1x128xf32> to vector<8x128xf32>
    %23 = arith.addf %20, %22 : vector<8x128xf32>
    %cst_22 = arith.constant 0.000000e+00 : f32
    %24 = vector.broadcast %cst_22 : f32 to vector<8x128xf32>
    %25 = arith.maximumf %23, %24 : vector<8x128xf32>
    %c0_23 = arith.constant 0 : index
    %c0_24 = arith.constant 0 : index
    %26 = vector.load %arg10[%c0_23, %c0_24] : memref<1x128xf32, #tpu.memory_space<vmem>>, vector<1x128xf32>
    %cst_25 = arith.constant dense<0.000000e+00> : vector<1x8xf32>
    %27 = tpu.matmul %26, %25, %cst_25 {dimension_numbers = #tpu.dot_dimension_numbers<[1], [1], [0], [0], [0, 0, 1, 0], [], []>} : vector<1x128xf32>, vector<8x128xf32>, vector<1x8xf32> -> vector<1x8xf32>
    %c0_26 = arith.constant 0 : index
    %c0_27 = arith.constant 0 : index
    %28 = vector.load %arg11[%c0_26, %c0_27] : memref<1x1xf32, #tpu.memory_space<vmem>>, vector<1x1xf32>
    %29 = vector.broadcast %28 : vector<1x1xf32> to vector<1x8xf32>
    %30 = arith.addf %27, %29 : vector<1x8xf32>
    %31 = vector.shape_cast %30 : vector<1x8xf32> to vector<1x1x8xf32>
    %c0_28 = arith.constant 0 : index
    %c0_29 = arith.constant 0 : index
    %c0_30 = arith.constant 0 : index
    %32 = vector.load %arg12[%c0_28, %c0_29, %c0_30] : memref<1x1x8xf32, #tpu.memory_space<vmem>>, vector<1x1x8xf32>
    tpu.vector_store %arg12[%c0_28, %c0_29, %c0_30], %31 {strides = array<i32>} : memref<1x1x8xf32, #tpu.memory_space<vmem>>, vector<1x1x8xf32>,
    return
  }
  func.func @transform_0(%arg0: i32) -> (i32, i32) {
    %c0_i32 = arith.constant 0 : i32
    %c0_i32_0 = arith.constant 0 : i32
    return %arg0, %c0_i32 : i32, i32
  }
  func.func @transform_1(%arg0: i32) -> (i32, i32) {
    %c0_i32 = arith.constant 0 : i32
    %c0_i32_0 = arith.constant 0 : i32
    return %arg0, %c0_i32 : i32, i32
  }
  func.func @transform_2(%arg0: i32) -> (i32, i32) {
    %c0_i32 = arith.constant 0 : i32
    %c0_i32_0 = arith.constant 0 : i32
    %c0_i32_1 = arith.constant 0 : i32
    return %c0_i32, %c0_i32_0 : i32, i32
  }
  func.func @transform_3(%arg0: i32) -> (i32, i32) {
    %c0_i32 = arith.constant 0 : i32
    %c0_i32_0 = arith.constant 0 : i32
    %c0_i32_1 = arith.constant 0 : i32
    return %c0_i32, %c0_i32_0 : i32, i32
  }
  func.func @transform_4(%arg0: i32) -> (i32, i32) {
    %c0_i32 = arith.constant 0 : i32
    %c0_i32_0 = arith.constant 0 : i32
    %c0_i32_1 = arith.constant 0 : i32
    return %c0_i32, %c0_i32_0 : i32, i32
  }
  func.func @transform_5(%arg0: i32) -> (i32, i32) {
    %c0_i32 = arith.constant 0 : i32
    %c0_i32_0 = arith.constant 0 : i32
    %c0_i32_1 = arith.constant 0 : i32
    return %c0_i32, %c0_i32_0 : i32, i32
  }
  func.func @transform_6(%arg0: i32) -> (i32, i32) {
    %c0_i32 = arith.constant 0 : i32
    %c0_i32_0 = arith.constant 0 : i32
    %c0_i32_1 = arith.constant 0 : i32
    return %c0_i32, %c0_i32_0 : i32, i32
  }
  func.func @transform_7(%arg0: i32) -> (i32, i32) {
    %c0_i32 = arith.constant 0 : i32
    %c0_i32_0 = arith.constant 0 : i32
    %c0_i32_1 = arith.constant 0 : i32
    return %c0_i32, %c0_i32_0 : i32, i32
  }
  func.func @transform_8(%arg0: i32) -> (i32, i32) {
    %c0_i32 = arith.constant 0 : i32
    %c0_i32_0 = arith.constant 0 : i32
    %c0_i32_1 = arith.constant 0 : i32
    return %c0_i32, %c0_i32_0 : i32, i32
  }
  func.func @transform_9(%arg0: i32) -> (i32, i32) {
    %c0_i32 = arith.constant 0 : i32
    %c0_i32_0 = arith.constant 0 : i32
    %c0_i32_1 = arith.constant 0 : i32
    return %c0_i32, %c0_i32_0 : i32, i32
  }
  func.func @transform_10(%arg0: i32) -> (i32, i32) {
    %c0_i32 = arith.constant 0 : i32
    %c0_i32_0 = arith.constant 0 : i32
    %c0_i32_1 = arith.constant 0 : i32
    return %c0_i32, %c0_i32_0 : i32, i32
  }
  func.func @transform_11(%arg0: i32) -> (i32, i32, i32) {
    %c0_i32 = arith.constant 0 : i32
    %c0_i32_0 = arith.constant 0 : i32
    %c0_i32_1 = arith.constant 0 : i32
    return %arg0, %c0_i32, %c0_i32_0 : i32, i32, i32
  }
}

module attributes {stable_mosaic.version = 11 : i64} {
  func.func @_mlp_kernel(%arg0: i32, %arg1: memref<8x64xf32, #tpu.memory_space<vmem>>, %arg2: memref<8x16xf32, #tpu.memory_space<vmem>>, %arg3: memref<64x128xf32, #tpu.memory_space<vmem>>, %arg4: memref<16x128xf32, #tpu.memory_space<vmem>>, %arg5: memref<1x128xf32, #tpu.memory_space<vmem>>, %arg6: memref<128x128xf32, #tpu.memory_space<vmem>>, %arg7: memref<1x128xf32, #tpu.memory_space<vmem>>, %arg8: memref<128x128xf32, #tpu.memory_space<vmem>>, %arg9: memref<1x128xf32, #tpu.memory_space<vmem>>, %arg10: memref<1x128xf32, #tpu.memory_space<vmem>>, %arg11: memref<1x1xf32, #tpu.memory_space<vmem>>, %arg12: memref<1x1x8xf32, #tpu.memory_space<vmem>>) attributes {dimension_semantics = [#tpu.dimension_semantics<parallel>], iteration_bounds = array<i64: 1>, scalar_prefetch = 0 : i64, scratch_operands = 0 : i64, tpu.core_type = #tpu.core_type<tc>, window_params = [{transform_indices = @transform_0, window_bounds = array<i64: 8, 64>}, {transform_indices = @transform_1, window_bounds = array<i64: 8, 16>}, {pipeline_mode = #tpu.pipeline_mode<synchronous>, transform_indices = @transform_2, window_bounds = array<i64: 64, 128>}, {pipeline_mode = #tpu.pipeline_mode<synchronous>, transform_indices = @transform_3, window_bounds = array<i64: 16, 128>}, {pipeline_mode = #tpu.pipeline_mode<synchronous>, transform_indices = @transform_4, window_bounds = array<i64: 1, 128>}, {pipeline_mode = #tpu.pipeline_mode<synchronous>, transform_indices = @transform_5, window_bounds = array<i64: 128, 128>}, {pipeline_mode = #tpu.pipeline_mode<synchronous>, transform_indices = @transform_6, window_bounds = array<i64: 1, 128>}, {pipeline_mode = #tpu.pipeline_mode<synchronous>, transform_indices = @transform_7, window_bounds = array<i64: 128, 128>}, {pipeline_mode = #tpu.pipeline_mode<synchronous>, transform_indices = @transform_8, window_bounds = array<i64: 1, 128>}, {pipeline_mode = #tpu.pipeline_mode<synchronous>, transform_indices = @transform_9, window_bounds = array<i64: 1, 128>}, {pipeline_mode = #tpu.pipeline_mode<synchronous>, transform_indices = @transform_10, window_bounds = array<i64: 1, 1>}, {transform_indices = @transform_11, window_bounds = array<i64: 1, 1, 8>}]} {
    %c0 = arith.constant 0 : index
    %c0_0 = arith.constant 0 : index
    %0 = vector.load %arg1[%c0, %c0_0] : memref<8x64xf32, #tpu.memory_space<vmem>>, vector<8x64xf32>
    %c0_1 = arith.constant 0 : index
    %c0_2 = arith.constant 0 : index
    %1 = vector.load %arg3[%c0_1, %c0_2] : memref<64x128xf32, #tpu.memory_space<vmem>>, vector<64x128xf32>
    %cst = arith.constant dense<0.000000e+00> : vector<8x128xf32>
    %2 = tpu.matmul %0, %1, %cst {dimension_numbers = #tpu.dot_dimension_numbers<[1], [0], [0], [1], [0, 0, 1, 1], [], []>} : vector<8x64xf32>, vector<64x128xf32>, vector<8x128xf32> -> vector<8x128xf32>
    %c0_3 = arith.constant 0 : index
    %c0_4 = arith.constant 0 : index
    %3 = vector.load %arg2[%c0_3, %c0_4] : memref<8x16xf32, #tpu.memory_space<vmem>>, vector<8x16xf32>
    %c0_5 = arith.constant 0 : index
    %c0_6 = arith.constant 0 : index
    %4 = vector.load %arg4[%c0_5, %c0_6] : memref<16x128xf32, #tpu.memory_space<vmem>>, vector<16x128xf32>
    %cst_7 = arith.constant dense<0.000000e+00> : vector<8x128xf32>
    %5 = tpu.matmul %3, %4, %cst_7 {dimension_numbers = #tpu.dot_dimension_numbers<[1], [0], [0], [1], [0, 0, 1, 1], [], []>} : vector<8x16xf32>, vector<16x128xf32>, vector<8x128xf32> -> vector<8x128xf32>
    %6 = arith.addf %2, %5 : vector<8x128xf32>
    %c0_8 = arith.constant 0 : index
    %c0_9 = arith.constant 0 : index
    %7 = vector.load %arg5[%c0_8, %c0_9] : memref<1x128xf32, #tpu.memory_space<vmem>>, vector<1x128xf32>
    %8 = vector.broadcast %7 : vector<1x128xf32> to vector<8x128xf32>
    %9 = arith.addf %6, %8 : vector<8x128xf32>
    %cst_10 = arith.constant 0.000000e+00 : f32
    %10 = vector.broadcast %cst_10 : f32 to vector<8x128xf32>
    %11 = arith.maximumf %9, %10 : vector<8x128xf32>
    %c0_11 = arith.constant 0 : index
    %c0_12 = arith.constant 0 : index
    %12 = vector.load %arg6[%c0_11, %c0_12] : memref<128x128xf32, #tpu.memory_space<vmem>>, vector<128x128xf32>
    %cst_13 = arith.constant dense<0.000000e+00> : vector<8x128xf32>
    %13 = tpu.matmul %11, %12, %cst_13 {dimension_numbers = #tpu.dot_dimension_numbers<[1], [0], [0], [1], [0, 0, 1, 1], [], []>} : vector<8x128xf32>, vector<128x128xf32>, vector<8x128xf32> -> vector<8x128xf32>
    %c0_14 = arith.constant 0 : index
    %c0_15 = arith.constant 0 : index
    %14 = vector.load %arg7[%c0_14, %c0_15] : memref<1x128xf32, #tpu.memory_space<vmem>>, vector<1x128xf32>
    %15 = vector.broadcast %14 : vector<1x128xf32> to vector<8x128xf32>
    %16 = arith.addf %13, %15 : vector<8x128xf32>
    %cst_16 = arith.constant 0.000000e+00 : f32
    %17 = vector.broadcast %cst_16 : f32 to vector<8x128xf32>
    %18 = arith.maximumf %16, %17 : vector<8x128xf32>
    %c0_17 = arith.constant 0 : index
    %c0_18 = arith.constant 0 : index
    %19 = vector.load %arg8[%c0_17, %c0_18] : memref<128x128xf32, #tpu.memory_space<vmem>>, vector<128x128xf32>
    %cst_19 = arith.constant dense<0.000000e+00> : vector<8x128xf32>
    %20 = tpu.matmul %18, %19, %cst_19 {dimension_numbers = #tpu.dot_dimension_numbers<[1], [0], [0], [1], [0, 0, 1, 1], [], []>} : vector<8x128xf32>, vector<128x128xf32>, vector<8x128xf32> -> vector<8x128xf32>
    %c0_20 = arith.constant 0 : index
    %c0_21 = arith.constant 0 : index
    %21 = vector.load %arg9[%c0_20, %c0_21] : memref<1x128xf32, #tpu.memory_space<vmem>>, vector<1x128xf32>
    %22 = vector.broadcast %21 : vector<1x128xf32> to vector<8x128xf32>
    %23 = arith.addf %20, %22 : vector<8x128xf32>
    %cst_22 = arith.constant 0.000000e+00 : f32
    %24 = vector.broadcast %cst_22 : f32 to vector<8x128xf32>
    %25 = arith.maximumf %23, %24 : vector<8x128xf32>
    %c0_23 = arith.constant 0 : index
    %c0_24 = arith.constant 0 : index
    %26 = vector.load %arg10[%c0_23, %c0_24] : memref<1x128xf32, #tpu.memory_space<vmem>>, vector<1x128xf32>
    %cst_25 = arith.constant dense<0.000000e+00> : vector<1x8xf32>
    %27 = tpu.matmul %26, %25, %cst_25 {dimension_numbers = #tpu.dot_dimension_numbers<[1], [1], [0], [0], [0, 0, 1, 0], [], []>} : vector<1x128xf32>, vector<8x128xf32>, vector<1x8xf32> -> vector<1x8xf32>
    %c0_26 = arith.constant 0 : index
    %c0_27 = arith.constant 0 : index
    %28 = vector.load %arg11[%c0_26, %c0_27] : memref<1x1xf32, #tpu.memory_space<vmem>>, vector<1x1xf32>
    %29 = vector.broadcast %28 : vector<1x1xf32> to vector<1x8xf32>
    %30 = arith.addf %27, %29 : vector<1x8xf32>
    %31 = vector.shape_cast %30 : vector<1x8xf32> to vector<1x1x8xf32>
    %c0_28 = arith.constant 0 : index
    %c0_29 = arith.constant 0 : index
    %c0_30 = arith.constant 0 : index
    %32 = vector.load %arg12[%c0_28, %c0_29, %c0_30] : memref<1x1x8xf32, #tpu.memory_space<vmem>>, vector<1x1x8xf32>
    tpu.vector_store %arg12[%c0_28, %c0_29, %c0_30], %31 {strides = array<i32>} : memref<1x1x8xf32, #tpu.memory_space<vmem>>, vector<1x1x8xf32>,
    return
  }
  func.func @transform_0(%arg0: i32) -> (i32, i32) {
    %c0_i32 = arith.constant 0 : i32
    %c0_i32_0 = arith.constant 0 : i32
    return %arg0, %c0_i32 : i32, i32
  }
  func.func @transform_1(%arg0: i32) -> (i32, i32) {
    %c0_i32 = arith.constant 0 : i32
    %c0_i32_0 = arith.constant 0 : i32
    return %arg0, %c0_i32 : i32, i32
  }
  func.func @transform_2(%arg0: i32) -> (i32, i32) {
    %c0_i32 = arith.constant 0 : i32
    %c0_i32_0 = arith.constant 0 : i32
    %c0_i32_1 = arith.constant 0 : i32
    return %c0_i32, %c0_i32_0 : i32, i32
  }
  func.func @transform_3(%arg0: i32) -> (i32, i32) {
    %c0_i32 = arith.constant 0 : i32
    %c0_i32_0 = arith.constant 0 : i32
    %c0_i32_1 = arith.constant 0 : i32
    return %c0_i32, %c0_i32_0 : i32, i32
  }
  func.func @transform_4(%arg0: i32) -> (i32, i32) {
    %c0_i32 = arith.constant 0 : i32
    %c0_i32_0 = arith.constant 0 : i32
    %c0_i32_1 = arith.constant 0 : i32
    return %c0_i32, %c0_i32_0 : i32, i32
  }
  func.func @transform_5(%arg0: i32) -> (i32, i32) {
    %c0_i32 = arith.constant 0 : i32
    %c0_i32_0 = arith.constant 0 : i32
    %c0_i32_1 = arith.constant 0 : i32
    return %c0_i32, %c0_i32_0 : i32, i32
  }
  func.func @transform_6(%arg0: i32) -> (i32, i32) {
    %c0_i32 = arith.constant 0 : i32
    %c0_i32_0 = arith.constant 0 : i32
    %c0_i32_1 = arith.constant 0 : i32
    return %c0_i32, %c0_i32_0 : i32, i32
  }
  func.func @transform_7(%arg0: i32) -> (i32, i32) {
    %c0_i32 = arith.constant 0 : i32
    %c0_i32_0 = arith.constant 0 : i32
    %c0_i32_1 = arith.constant 0 : i32
    return %c0_i32, %c0_i32_0 : i32, i32
  }
  func.func @transform_8(%arg0: i32) -> (i32, i32) {
    %c0_i32 = arith.constant 0 : i32
    %c0_i32_0 = arith.constant 0 : i32
    %c0_i32_1 = arith.constant 0 : i32
    return %c0_i32, %c0_i32_0 : i32, i32
  }
  func.func @transform_9(%arg0: i32) -> (i32, i32) {
    %c0_i32 = arith.constant 0 : i32
    %c0_i32_0 = arith.constant 0 : i32
    %c0_i32_1 = arith.constant 0 : i32
    return %c0_i32, %c0_i32_0 : i32, i32
  }
  func.func @transform_10(%arg0: i32) -> (i32, i32) {
    %c0_i32 = arith.constant 0 : i32
    %c0_i32_0 = arith.constant 0 : i32
    %c0_i32_1 = arith.constant 0 : i32
    return %c0_i32, %c0_i32_0 : i32, i32
  }
  func.func @transform_11(%arg0: i32) -> (i32, i32, i32) {
    %c0_i32 = arith.constant 0 : i32
    %c0_i32_0 = arith.constant 0 : i32
    %c0_i32_1 = arith.constant 0 : i32
    return %arg0, %c0_i32, %c0_i32_0 : i32, i32, i32
  }
}

</mosaic_0001>

<llo_original>
// kernel: tpu_custom_call.1
$region0: #{tpu_custom_call.1}
  #allocation0 [shape = 'u32[]', space=smem, size = 0x4, offset = 0x4, fixed_abs, tag = 'smem constant byte address 0x4 - core index']
  #allocation1 [shape = 'u32[72,128]{1,0:T(1,128)}', space=vmem, size = 0x9000, scoped, tag = 'internal scratch']
  #allocation2 [shape = 'f32[1,1]{1,0:T(1,128)S(1)}', space=vmem, size = 0x200, scoped, tag = 'scoped memory for tpu_custom_call.1']
  %s0 = inlined_call_operand.hbm [shape: f32[8,64], index: 0, kind: input, shape index: {}]
  %s1 = inlined_call_operand.hbm [shape: f32[8,16], index: 1, kind: input, shape index: {}]
  %s2 = inlined_call_operand.hbm [shape: f32[64,128], index: 2, kind: input, shape index: {}]
  %s3 = inlined_call_operand.hbm [shape: f32[16,128], index: 3, kind: input, shape index: {}]
  %s4 = inlined_call_operand.vmem [shape: f32[1,128], index: 4, kind: input, shape index: {}]
  %s5 = inlined_call_operand.hbm [shape: f32[128,128], index: 5, kind: input, shape index: {}]
  %s6 = inlined_call_operand.vmem [shape: f32[1,128], index: 6, kind: input, shape index: {}]
  %s7 = inlined_call_operand.hbm [shape: f32[128,128], index: 7, kind: input, shape index: {}]
  %s8 = inlined_call_operand.vmem [shape: f32[1,128], index: 8, kind: input, shape index: {}]
  %s9 = inlined_call_operand.vmem [shape: f32[1,128], index: 9, kind: input, shape index: {}]
  %s10 = inlined_call_operand.<no memory space> [shape: f32[1,1], index: 10, kind: input, shape index: {}]
  %s11 = inlined_call_operand.hbm [shape: f32[1,1,8], index: 11, kind: output, shape index: {}]
  %s12 = sld [smem:[#allocation0]]
  $region78: #{tpu_custom_call.1} parent=0
    _
  %s14 = ssub.s32 1, %s12
  %s15 = scalar_select 0, %s14, %s12
  %v16 = vstv %s10
  %17 = vst [vmem:[#allocation2] sm:$0x1] %v16
  $region1: #{tpu_custom_call.1} parent=0
    #allocation3 [shape = 'u8[4096]{0}', space=vmem, size = 0x1000, scoped, tag = 'input window, operand 0, single buffered']
    #allocation4 [shape = 's32[1]{0}', space=sflag, size = 0x4, scoped, tag = 'scoped memory for tpu_custom_call.1']
    #allocation5 [shape = 's32[1]{0}', space=sflag, size = 0x4, scoped, tag = 'scoped memory for tpu_custom_call.1']
    #allocation6 [shape = 'u8[4096]{0}', space=vmem, size = 0x1000, scoped, tag = 'input window, operand 1, single buffered']
    #allocation7 [shape = 's32[1]{0}', space=sflag, size = 0x4, scoped, tag = 'scoped memory for tpu_custom_call.1']
    #allocation8 [shape = 'u8[32768]{0}', space=vmem, size = 0x8000, scoped, tag = 'input window, operand 2, single buffered']
    #allocation9 [shape = 'u8[8192]{0}', space=vmem, size = 0x2000, scoped, tag = 'input window, operand 3, single buffered']
    #allocation10 [shape = 's32[1]{0}', space=sflag, size = 0x4, scoped, tag = 'scoped memory for tpu_custom_call.1']
    #allocation11 [shape = 'u8[65536]{0}', space=vmem, size = 0x10000, scoped, tag = 'input window, operand 5, single buffered']
    #allocation12 [shape = 'u8[65536]{0}', space=vmem, size = 0x10000, scoped, tag = 'input window, operand 7, single buffered']
    #allocation13 [shape = 's32[1]{0}', space=sflag, size = 0x4, scoped, tag = 'scoped memory for tpu_custom_call.1']
    #allocation14 [shape = 'u8[512]{0}', space=vmem, size = 0x400, scoped, tag = 'output window, operand 0, single buffered']
    %18 = vsyncpa [#allocation4], 0
    %19 = vsyncpa [#allocation7], 0
    %20 = vsyncpa [#allocation10], 0
    %21 = vsyncpa [#allocation13], 0
    %22 = vsyncpa [#allocation5], 0
    // Predicated region
    $region2: #{tpu_custom_call.1} parent=1 // pred_check
      _
    $region3: #{tpu_custom_call.1} parent=1 // pred_check_branch
      %24 = sbr.rel (0) target = $region5
    $region4: #{tpu_custom_call.1} parent=1 // pred_region
      %26 = vsyncadd [#allocation4], 0
      %s28 = sshll.u32 %s0, 4
      %s29 = int_to_ptr.hbm [resolvable:$true] %s28
      %s30 = sshll.u32 [#allocation3], 4
      %s31 = int_to_ptr.vmem [resolvable:$true] %s30
      %33 = dma.hbm_to_vmem [thread:$0]  %s29, 128, %s31, [#allocation4]
    $region5: #{tpu_custom_call.1} parent=1 // pred_fallthru
      _
    // Predicated region
    $region6: #{tpu_custom_call.1} parent=1 // pred_check
      _
    $region7: #{tpu_custom_call.1} parent=1 // pred_check_branch
      %35 = sbr.rel (0) target = $region9
    $region8: #{tpu_custom_call.1} parent=1 // pred_region
      %37 = vsyncadd [#allocation7], 0
      %s39 = sshll.u32 %s1, 4
      %s40 = int_to_ptr.hbm [resolvable:$true] %s39
      %s41 = sshll.u32 [#allocation6], 4
      %s42 = int_to_ptr.vmem [resolvable:$true] %s41
      %44 = dma.hbm_to_vmem [thread:$0]  %s40, 128, %s42, [#allocation7]
    $region9: #{tpu_custom_call.1} parent=1 // pred_fallthru
      _
    // Predicated region
    $region10: #{tpu_custom_call.1} parent=1 // pred_check
      _
    $region11: #{tpu_custom_call.1} parent=1 // pred_check_branch
      %46 = sbr.rel (0) target = $region13
    $region12: #{tpu_custom_call.1} parent=1 // pred_region
      %48 = vsyncadd [#allocation7], 0
      %s49 = sshll.u32 %s2, 4
      %s50 = int_to_ptr.hbm [resolvable:$true] %s49
      %s51 = sshll.u32 [#allocation8], 4
      %s52 = int_to_ptr.vmem [resolvable:$true] %s51
      %57 = dma.hbm_to_vmem [thread:$0]  %s50, 1024, %s52, [#allocation7], 128, 128, 8
    $region13: #{tpu_custom_call.1} parent=1 // pred_fallthru
      _
    // Predicated region
    $region14: #{tpu_custom_call.1} parent=1 // pred_check
      _
    $region15: #{tpu_custom_call.1} parent=1 // pred_check_branch
      %59 = sbr.rel (0) target = $region17
    $region16: #{tpu_custom_call.1} parent=1 // pred_region
      %61 = vsyncadd [#allocation10], 0
      %s62 = sshll.u32 %s3, 4
      %s63 = int_to_ptr.hbm [resolvable:$true] %s62
      %s64 = sshll.u32 [#allocation9], 4
      %s65 = int_to_ptr.vmem [resolvable:$true] %s64
      %70 = dma.hbm_to_vmem [thread:$0]  %s63, 256, %s65, [#allocation10], 128, 128, 8
    $region17: #{tpu_custom_call.1} parent=1 // pred_fallthru
      _
    // Predicated region
    $region18: #{tpu_custom_call.1} parent=1 // pred_check
      _
    $region19: #{tpu_custom_call.1} parent=1 // pred_check_branch
      %72 = sbr.rel (0) target = $region21
    $region20: #{tpu_custom_call.1} parent=1 // pred_region
      _
    $region21: #{tpu_custom_call.1} parent=1 // pred_fallthru
      _
    // Predicated region
    $region22: #{tpu_custom_call.1} parent=1 // pred_check
      _
    $region23: #{tpu_custom_call.1} parent=1 // pred_check_branch
      %74 = sbr.rel (0) target = $region25
    $region24: #{tpu_custom_call.1} parent=1 // pred_region
      %76 = vsyncadd [#allocation10], 0
      %s77 = sshll.u32 %s5, 4
      %s78 = int_to_ptr.hbm [resolvable:$true] %s77
      %s79 = sshll.u32 [#allocation11], 4
      %s80 = int_to_ptr.vmem [resolvable:$true] %s79
      %85 = dma.hbm_to_vmem [thread:$0]  %s78, 2048, %s80, [#allocation10], 128, 128, 8
    $region25: #{tpu_custom_call.1} parent=1 // pred_fallthru
      _
    // Predicated region
    $region26: #{tpu_custom_call.1} parent=1 // pred_check
      _
    $region27: #{tpu_custom_call.1} parent=1 // pred_check_branch
      %87 = sbr.rel (0) target = $region29
    $region28: #{tpu_custom_call.1} parent=1 // pred_region
      _
    $region29: #{tpu_custom_call.1} parent=1 // pred_fallthru
      _
    // Predicated region
    $region30: #{tpu_custom_call.1} parent=1 // pred_check
      _
    $region31: #{tpu_custom_call.1} parent=1 // pred_check_branch
      %89 = sbr.rel (0) target = $region33
    $region32: #{tpu_custom_call.1} parent=1 // pred_region
      %91 = vsyncadd [#allocation13], 0
      %s92 = sshll.u32 %s7, 4
      %s93 = int_to_ptr.hbm [resolvable:$true] %s92
      %s94 = sshll.u32 [#allocation12], 4
      %s95 = int_to_ptr.vmem [resolvable:$true] %s94
      %100 = dma.hbm_to_vmem [thread:$0]  %s93, 2048, %s95, [#allocation13], 128, 128, 8
    $region33: #{tpu_custom_call.1} parent=1 // pred_fallthru
      _
    // Predicated region
    $region34: #{tpu_custom_call.1} parent=1 // pred_check
      _
    $region35: #{tpu_custom_call.1} parent=1 // pred_check_branch
      %102 = sbr.rel (0) target = $region37
    $region36: #{tpu_custom_call.1} parent=1 // pred_region
      _
    $region37: #{tpu_custom_call.1} parent=1 // pred_fallthru
      _
    // Predicated region
    $region38: #{tpu_custom_call.1} parent=1 // pred_check
      _
    $region39: #{tpu_custom_call.1} parent=1 // pred_check_branch
      %104 = sbr.rel (0) target = $region41
    $region40: #{tpu_custom_call.1} parent=1 // pred_region
      _
    $region41: #{tpu_custom_call.1} parent=1 // pred_fallthru
      _
    // Predicated region
    $region42: #{tpu_custom_call.1} parent=1 // pred_check
      _
    $region43: #{tpu_custom_call.1} parent=1 // pred_check_branch
      %106 = sbr.rel (0) target = $region45
    $region44: #{tpu_custom_call.1} parent=1 // pred_region
      _
    $region45: #{tpu_custom_call.1} parent=1 // pred_fallthru
      _
    // Predicated region
    $region46: #{tpu_custom_call.1} parent=1 // pred_check
      _
    $region47: #{tpu_custom_call.1} parent=1 // pred_check_branch
      %108 = sbr.rel (0) target = $region49
    $region48: #{tpu_custom_call.1} parent=1 // pred_region
      %110 = dma.done [#allocation4], 128
    $region49: #{tpu_custom_call.1} parent=1 // pred_fallthru
      _
    // Predicated region
    $region50: #{tpu_custom_call.1} parent=1 // pred_check
      _
    $region51: #{tpu_custom_call.1} parent=1 // pred_check_branch
      %112 = sbr.rel (0) target = $region53
    $region52: #{tpu_custom_call.1} parent=1 // pred_region
      %114 = dma.done [#allocation7], 128
    $region53: #{tpu_custom_call.1} parent=1 // pred_fallthru
      _
    // Predicated region
    $region54: #{tpu_custom_call.1} parent=1 // pred_check
      _
    $region55: #{tpu_custom_call.1} parent=1 // pred_check_branch
      %116 = sbr.rel (0) target = $region57
    $region56: #{tpu_custom_call.1} parent=1 // pred_region
      %118 = dma.done [#allocation7], 1024
    $region57: #{tpu_custom_call.1} parent=1 // pred_fallthru
      _
    // Predicated region
    $region58: #{tpu_custom_call.1} parent=1 // pred_check
      _
    $region59: #{tpu_custom_call.1} parent=1 // pred_check_branch
      %120 = sbr.rel (0) target = $region61
    $region60: #{tpu_custom_call.1} parent=1 // pred_region
      %122 = dma.done [#allocation10], 256
    $region61: #{tpu_custom_call.1} parent=1 // pred_fallthru
      _
    // Predicated region
    $region62: #{tpu_custom_call.1} parent=1 // pred_check
      _
    $region63: #{tpu_custom_call.1} parent=1 // pred_check_branch
      %124 = sbr.rel (0) target = $region65
    $region64: #{tpu_custom_call.1} parent=1 // pred_region
      %126 = dma.done [#allocation10], 2048
    $region65: #{tpu_custom_call.1} parent=1 // pred_fallthru
      _
    // Predicated region
    $region66: #{tpu_custom_call.1} parent=1 // pred_check
      _
    $region67: #{tpu_custom_call.1} parent=1 // pred_check_branch
      %128 = sbr.rel (0) target = $region69
    $region68: #{tpu_custom_call.1} parent=1 // pred_region
      %130 = dma.done [#allocation13], 2048
    $region69: #{tpu_custom_call.1} parent=1 // pred_fallthru
      _
    %v131 = vld [vmem:[#allocation3] sm:$0xff]
    %v132 = vld [vmem:[#allocation8] sm:$0xff]
    %v133 = vld [vmem:[#allocation8 + $0x8] sm:$0xff]
    %v134 = vld [vmem:[#allocation8 + $0x10] sm:$0xff]
    %v135 = vld [vmem:[#allocation8 + $0x18] sm:$0xff]
    %v136 = vld [vmem:[#allocation8 + $0x20] sm:$0xff]
    %v137 = vld [vmem:[#allocation8 + $0x28] sm:$0xff]
    %v138 = vld [vmem:[#allocation8 + $0x30] sm:$0xff]
    %v139 = vld [vmem:[#allocation8 + $0x38] sm:$0xff]
    %v140 = vld [vmem:[#allocation6] sm:$0xff]
    %v141 = vld [vmem:[#allocation9] sm:$0xff]
    %v142 = vld [vmem:[#allocation9 + $0x8] sm:$0xff]
    %vm143 = vcmask 130048
    %v145 = vsel %vm143, %v140, 0
    %147 = vmatpush.msra.mxu0 0.0
    %148 = vmatpush.msra.mxu0 0.0
    %149 = vmatpush.msra.mxu0 0.0
    %150 = vmatpush.msra.mxu0 0.0
    %151 = vmatpush.msra.mxu0 0.0
    %152 = vmatpush.msra.mxu0 0.0
    %153 = vmatpush.msra.mxu0 0.0
    %154 = vmatpush.msra.mxu0 0.0
    %155 = vmatpush.msra.mxu0 0.0
    %156 = vmatpush.msra.mxu0 0.0
    %157 = vmatpush.msra.mxu0 0.0
    %158 = vmatpush.msra.mxu0 0.0
    %159 = vmatpush.msra.mxu0 0.0
    %160 = vmatpush.msra.mxu0 0.0
    %161 = vmatpush.msra.mxu0 %v142
    %162 = vmatpush.msra.mxu0 %v141
    %163 = vmatmul.f32.gmra.mxu0 %v145
    %v164 = vpop.f32.mrf.mxu0
    %v165 = vadd.f32 0.0, %v164
    %166 = vdwg.mxu0
    %vm167 = vcmask 523264
    %v169 = vsel %vm167, %v131, 0
    %171 = vmatpush.msra.mxu0 0.0
    %172 = vmatpush.msra.mxu0 0.0
    %173 = vmatpush.msra.mxu0 0.0
    %174 = vmatpush.msra.mxu0 0.0
    %175 = vmatpush.msra.mxu0 0.0
    %176 = vmatpush.msra.mxu0 0.0
    %177 = vmatpush.msra.mxu0 0.0
    %178 = vmatpush.msra.mxu0 0.0
    %179 = vmatpush.msra.mxu0 %v139
    %180 = vmatpush.msra.mxu0 %v138
    %181 = vmatpush.msra.mxu0 %v137
    %182 = vmatpush.msra.mxu0 %v136
    %183 = vmatpush.msra.mxu0 %v135
    %184 = vmatpush.msra.mxu0 %v134
    %185 = vmatpush.msra.mxu0 %v133
    %186 = vmatpush.msra.mxu0 %v132
    %187 = vmatmul.f32.gmra.mxu0 %v169
    %v188 = vpop.f32.mrf.mxu0
    %v189 = vadd.f32 %v165, %v188
    %190 = vdwg.mxu0
    %v191 = vld [vmem:[%s4] sm:$0x1]
    %v193 = vperm.slane %v191, 0
    %v195 = vadd.f32 %v189, %v193
    %v196 = vmax.f32 %v195, 0.0
    %v197 = vld [vmem:[#allocation11] sm:$0xff]
    %v198 = vld [vmem:[#allocation11 + $0x8] sm:$0xff]
    %v199 = vld [vmem:[#allocation11 + $0x10] sm:$0xff]
    %v200 = vld [vmem:[#allocation11 + $0x18] sm:$0xff]
    %v201 = vld [vmem:[#allocation11 + $0x20] sm:$0xff]
    %v202 = vld [vmem:[#allocation11 + $0x28] sm:$0xff]
    %v203 = vld [vmem:[#allocation11 + $0x30] sm:$0xff]
    %v204 = vld [vmem:[#allocation11 + $0x38] sm:$0xff]
    %v205 = vld [vmem:[#allocation11 + $0x40] sm:$0xff]
    %v206 = vld [vmem:[#allocation11 + $0x48] sm:$0xff]
    %v207 = vld [vmem:[#allocation11 + $0x50] sm:$0xff]
    %v208 = vld [vmem:[#allocation11 + $0x58] sm:$0xff]
    %v209 = vld [vmem:[#allocation11 + $0x60] sm:$0xff]
    %v210 = vld [vmem:[#allocation11 + $0x68] sm:$0xff]
    %v211 = vld [vmem:[#allocation11 + $0x70] sm:$0xff]
    %v212 = vld [vmem:[#allocation11 + $0x78] sm:$0xff]
    %v213 = vld [vmem:[%s6] sm:$0x1]
    %v215 = vperm.slane %v213, 0
    %217 = vmatpush.msra.mxu0 %v212
    %218 = vmatpush.msra.mxu0 %v211
    %219 = vmatpush.msra.mxu0 %v210
    %220 = vmatpush.msra.mxu0 %v209
    %221 = vmatpush.msra.mxu0 %v208
    %222 = vmatpush.msra.mxu0 %v207
    %223 = vmatpush.msra.mxu0 %v206
    %224 = vmatpush.msra.mxu0 %v205
    %225 = vmatpush.msra.mxu0 %v204
    %226 = vmatpush.msra.mxu0 %v203
    %227 = vmatpush.msra.mxu0 %v202
    %228 = vmatpush.msra.mxu0 %v201
    %229 = vmatpush.msra.mxu0 %v200
    %230 = vmatpush.msra.mxu0 %v199
    %231 = vmatpush.msra.mxu0 %v198
    %232 = vmatpush.msra.mxu0 %v197
    %233 = vmatmul.f32.gmra.mxu0 %v196
    %v234 = vpop.f32.mrf.mxu0
    %v235 = vadd.f32 %v215, %v234
    %236 = vdwg.mxu0
    %v237 = vmax.f32 %v235, 0.0
    %v238 = vld [vmem:[#allocation12] sm:$0xff]
    %v239 = vld [vmem:[#allocation12 + $0x8] sm:$0xff]
    %v240 = vld [vmem:[#allocation12 + $0x10] sm:$0xff]
    %v241 = vld [vmem:[#allocation12 + $0x18] sm:$0xff]
    %v242 = vld [vmem:[#allocation12 + $0x20] sm:$0xff]
    %v243 = vld [vmem:[#allocation12 + $0x28] sm:$0xff]
    %v244 = vld [vmem:[#allocation12 + $0x30] sm:$0xff]
    %v245 = vld [vmem:[#allocation12 + $0x38] sm:$0xff]
    %v246 = vld [vmem:[#allocation12 + $0x40] sm:$0xff]
    %v247 = vld [vmem:[#allocation12 + $0x48] sm:$0xff]
    %v248 = vld [vmem:[#allocation12 + $0x50] sm:$0xff]
    %v249 = vld [vmem:[#allocation12 + $0x58] sm:$0xff]
    %v250 = vld [vmem:[#allocation12 + $0x60] sm:$0xff]
    %v251 = vld [vmem:[#allocation12 + $0x68] sm:$0xff]
    %v252 = vld [vmem:[#allocation12 + $0x70] sm:$0xff]
    %v253 = vld [vmem:[#allocation12 + $0x78] sm:$0xff]
    %v254 = vld [vmem:[%s8] sm:$0x1]
    %v256 = vperm.slane %v254, 0
    %258 = vmatpush.msra.mxu0 %v253
    %259 = vmatpush.msra.mxu0 %v252
    %260 = vmatpush.msra.mxu0 %v251
    %261 = vmatpush.msra.mxu0 %v250
    %262 = vmatpush.msra.mxu0 %v249
    %263 = vmatpush.msra.mxu0 %v248
    %264 = vmatpush.msra.mxu0 %v247
    %265 = vmatpush.msra.mxu0 %v246
    %266 = vmatpush.msra.mxu0 %v245
    %267 = vmatpush.msra.mxu0 %v244
    %268 = vmatpush.msra.mxu0 %v243
    %269 = vmatpush.msra.mxu0 %v242
    %270 = vmatpush.msra.mxu0 %v241
    %271 = vmatpush.msra.mxu0 %v240
    %272 = vmatpush.msra.mxu0 %v239
    %273 = vmatpush.msra.mxu0 %v238
    %274 = vmatmul.f32.gmra.mxu0 %v237
    %v275 = vpop.f32.mrf.mxu0
    %v276 = vadd.f32 %v256, %v275
    %277 = vdwg.mxu0
    %v278 = vmax.f32 %v276, 0.0
    %v279 = vld [vmem:[%s9] sm:$0x1]
    %v280 = vld [vmem:[#allocation2] sm:$0x1]
    %282 = vset.pattern.permute.xlu0 0
    %283 = vperm.xlu0 %282, %v280
    %v284 = vpop.permute.xlu0 %283
    %v286 = vperm.slane %v284, 0
    %287 = vmatpush.xpose.msra.mxu0 0.0
    %288 = vmatpush.xpose.msra.mxu0 0.0
    %289 = vmatpush.xpose.msra.mxu0 0.0
    %290 = vmatpush.xpose.msra.mxu0 0.0
    %291 = vmatpush.xpose.msra.mxu0 0.0
    %292 = vmatpush.xpose.msra.mxu0 0.0
    %293 = vmatpush.xpose.msra.mxu0 0.0
    %294 = vmatpush.xpose.msra.mxu0 0.0
    %295 = vmatpush.xpose.msra.mxu0 0.0
    %296 = vmatpush.xpose.msra.mxu0 0.0
    %297 = vmatpush.xpose.msra.mxu0 0.0
    %298 = vmatpush.xpose.msra.mxu0 0.0
    %299 = vmatpush.xpose.msra.mxu0 0.0
    %300 = vmatpush.xpose.msra.mxu0 0.0
    %301 = vmatpush.xpose.msra.mxu0 0.0
    %302 = vmatpush.xpose.msra.mxu0 %v278
    %303 = vmatmul.f32.gmra.mxu0 %v279
    %v304 = vpop.f32.mrf.mxu0
    %v305 = vadd.f32 %v286, %v304
    %306 = vdwg.mxu0
    %vm307 = vcmask 57344
    %308 = vst.msk [vmem:[#allocation14] sm:$0x1] %vm307, %v305
    // Predicated region
    $region70: #{tpu_custom_call.1} parent=1 // pred_check
      _
    $region71: #{tpu_custom_call.1} parent=1 // pred_check_branch
      %310 = sbr.rel (0) target = $region73
    $region72: #{tpu_custom_call.1} parent=1 // pred_region
      %312 = vsyncadd [#allocation5], 0
      %s314 = sshll.u32 [#allocation14], 4
      %s315 = int_to_ptr.vmem [resolvable:$true] %s314
      %s316 = sshll.u32 %s11, 4
      %s317 = int_to_ptr.hbm [resolvable:$true] %s316
      %319 = dma.vmem_to_hbm [thread:$0]  %s315, 16, %s317, [#allocation5]
    $region73: #{tpu_custom_call.1} parent=1 // pred_fallthru
      _
    // Predicated region
    $region74: #{tpu_custom_call.1} parent=1 // pred_check
      _
    $region75: #{tpu_custom_call.1} parent=1 // pred_check_branch
      %321 = sbr.rel (0) target = $region77
    $region76: #{tpu_custom_call.1} parent=1 // pred_region
      %323 = dma.done [#allocation5], 16
    $region77: #{tpu_custom_call.1} parent=1 // pred_fallthru
      _
    %324 = vsyncpa [#allocation4], 1
    %325 = vsyncpa [#allocation7], 1
    %326 = vsyncpa [#allocation10], 1
    %327 = vsyncpa [#allocation13], 1
    %328 = vsyncpa [#allocation5], 1

// kernel: tpu_custom_call.1
$region0: #{tpu_custom_call.1}
  #allocation0 [shape = 'u32[]', space=smem, size = 0x4, offset = 0x4, fixed_abs, tag = 'smem constant byte address 0x4 - core index']
  #allocation1 [shape = 'u32[72,128]{1,0:T(1,128)}', space=vmem, size = 0x9000, scoped, tag = 'internal scratch']
  #allocation2 [shape = 'f32[1,1]{1,0:T(1,128)S(1)}', space=vmem, size = 0x200, scoped, tag = 'scoped memory for tpu_custom_call.1']
  %s0 = inlined_call_operand.hbm [shape: f32[8,64], index: 0, kind: input, shape index: {}]
  %s1 = inlined_call_operand.hbm [shape: f32[8,16], index: 1, kind: input, shape index: {}]
  %s2 = inlined_call_operand.hbm [shape: f32[64,128], index: 2, kind: input, shape index: {}]
  %s3 = inlined_call_operand.hbm [shape: f32[16,128], index: 3, kind: input, shape index: {}]
  %s4 = inlined_call_operand.vmem [shape: f32[1,128], index: 4, kind: input, shape index: {}]
  %s5 = inlined_call_operand.hbm [shape: f32[128,128], index: 5, kind: input, shape index: {}]
  %s6 = inlined_call_operand.vmem [shape: f32[1,128], index: 6, kind: input, shape index: {}]
  %s7 = inlined_call_operand.hbm [shape: f32[128,128], index: 7, kind: input, shape index: {}]
  %s8 = inlined_call_operand.vmem [shape: f32[1,128], index: 8, kind: input, shape index: {}]
  %s9 = inlined_call_operand.vmem [shape: f32[1,128], index: 9, kind: input, shape index: {}]
  %s10 = inlined_call_operand.<no memory space> [shape: f32[1,1], index: 10, kind: input, shape index: {}]
  %s11 = inlined_call_operand.hbm [shape: f32[1,1,8], index: 11, kind: output, shape index: {}]
  %s12 = sld [smem:[#allocation0]]
  $region78: #{tpu_custom_call.1} parent=0
    _
  %s14 = ssub.s32 1, %s12
  %s15 = scalar_select 0, %s14, %s12
  %v16 = vstv %s10
  %17 = vst [vmem:[#allocation2] sm:$0x1] %v16
  $region1: #{tpu_custom_call.1} parent=0
    #allocation3 [shape = 'u8[4096]{0}', space=vmem, size = 0x1000, scoped, tag = 'input window, operand 0, single buffered']
    #allocation4 [shape = 's32[1]{0}', space=sflag, size = 0x4, scoped, tag = 'scoped memory for tpu_custom_call.1']
    #allocation5 [shape = 's32[1]{0}', space=sflag, size = 0x4, scoped, tag = 'scoped memory for tpu_custom_call.1']
    #allocation6 [shape = 'u8[4096]{0}', space=vmem, size = 0x1000, scoped, tag = 'input window, operand 1, single buffered']
    #allocation7 [shape = 's32[1]{0}', space=sflag, size = 0x4, scoped, tag = 'scoped memory for tpu_custom_call.1']
    #allocation8 [shape = 'u8[32768]{0}', space=vmem, size = 0x8000, scoped, tag = 'input window, operand 2, single buffered']
    #allocation9 [shape = 'u8[8192]{0}', space=vmem, size = 0x2000, scoped, tag = 'input window, operand 3, single buffered']
    #allocation10 [shape = 's32[1]{0}', space=sflag, size = 0x4, scoped, tag = 'scoped memory for tpu_custom_call.1']
    #allocation11 [shape = 'u8[65536]{0}', space=vmem, size = 0x10000, scoped, tag = 'input window, operand 5, single buffered']
    #allocation12 [shape = 'u8[65536]{0}', space=vmem, size = 0x10000, scoped, tag = 'input window, operand 7, single buffered']
    #allocation13 [shape = 's32[1]{0}', space=sflag, size = 0x4, scoped, tag = 'scoped memory for tpu_custom_call.1']
    #allocation14 [shape = 'u8[512]{0}', space=vmem, size = 0x400, scoped, tag = 'output window, operand 0, single buffered']
    %18 = vsyncpa [#allocation4], 0
    %19 = vsyncpa [#allocation7], 0
    %20 = vsyncpa [#allocation10], 0
    %21 = vsyncpa [#allocation13], 0
    %22 = vsyncpa [#allocation5], 0
    // Predicated region
    $region2: #{tpu_custom_call.1} parent=1 // pred_check
      _
    $region3: #{tpu_custom_call.1} parent=1 // pred_check_branch
      %24 = sbr.rel (0) target = $region5
    $region4: #{tpu_custom_call.1} parent=1 // pred_region
      %26 = vsyncadd [#allocation4], 0
      %s28 = sshll.u32 %s0, 4
      %s29 = int_to_ptr.hbm [resolvable:$true] %s28
      %s30 = sshll.u32 [#allocation3], 4
      %s31 = int_to_ptr.vmem [resolvable:$true] %s30
      %33 = dma.hbm_to_vmem [thread:$0]  %s29, 128, %s31, [#allocation4]
    $region5: #{tpu_custom_call.1} parent=1 // pred_fallthru
      _
    // Predicated region
    $region6: #{tpu_custom_call.1} parent=1 // pred_check
      _
    $region7: #{tpu_custom_call.1} parent=1 // pred_check_branch
      %35 = sbr.rel (0) target = $region9
    $region8: #{tpu_custom_call.1} parent=1 // pred_region
      %37 = vsyncadd [#allocation7], 0
      %s39 = sshll.u32 %s1, 4
      %s40 = int_to_ptr.hbm [resolvable:$true] %s39
      %s41 = sshll.u32 [#allocation6], 4
      %s42 = int_to_ptr.vmem [resolvable:$true] %s41
      %44 = dma.hbm_to_vmem [thread:$0]  %s40, 128, %s42, [#allocation7]
    $region9: #{tpu_custom_call.1} parent=1 // pred_fallthru
      _
    // Predicated region
    $region10: #{tpu_custom_call.1} parent=1 // pred_check
      _
    $region11: #{tpu_custom_call.1} parent=1 // pred_check_branch
      %46 = sbr.rel (0) target = $region13
    $region12: #{tpu_custom_call.1} parent=1 // pred_region
      %48 = vsyncadd [#allocation7], 0
      %s49 = sshll.u32 %s2, 4
      %s50 = int_to_ptr.hbm [resolvable:$true] %s49
      %s51 = sshll.u32 [#allocation8], 4
      %s52 = int_to_ptr.vmem [resolvable:$true] %s51
      %57 = dma.hbm_to_vmem [thread:$0]  %s50, 1024, %s52, [#allocation7], 128, 128, 8
    $region13: #{tpu_custom_call.1} parent=1 // pred_fallthru
      _
    // Predicated region
    $region14: #{tpu_custom_call.1} parent=1 // pred_check
      _
    $region15: #{tpu_custom_call.1} parent=1 // pred_check_branch
      %59 = sbr.rel (0) target = $region17
    $region16: #{tpu_custom_call.1} parent=1 // pred_region
      %61 = vsyncadd [#allocation10], 0
      %s62 = sshll.u32 %s3, 4
      %s63 = int_to_ptr.hbm [resolvable:$true] %s62
      %s64 = sshll.u32 [#allocation9], 4
      %s65 = int_to_ptr.vmem [resolvable:$true] %s64
      %70 = dma.hbm_to_vmem [thread:$0]  %s63, 256, %s65, [#allocation10], 128, 128, 8
    $region17: #{tpu_custom_call.1} parent=1 // pred_fallthru
      _
    // Predicated region
    $region18: #{tpu_custom_call.1} parent=1 // pred_check
      _
    $region19: #{tpu_custom_call.1} parent=1 // pred_check_branch
      %72 = sbr.rel (0) target = $region21
    $region20: #{tpu_custom_call.1} parent=1 // pred_region
      _
    $region21: #{tpu_custom_call.1} parent=1 // pred_fallthru
      _
    // Predicated region
    $region22: #{tpu_custom_call.1} parent=1 // pred_check
      _
    $region23: #{tpu_custom_call.1} parent=1 // pred_check_branch
      %74 = sbr.rel (0) target = $region25
    $region24: #{tpu_custom_call.1} parent=1 // pred_region
      %76 = vsyncadd [#allocation10], 0
      %s77 = sshll.u32 %s5, 4
      %s78 = int_to_ptr.hbm [resolvable:$true] %s77
      %s79 = sshll.u32 [#allocation11], 4
      %s80 = int_to_ptr.vmem [resolvable:$true] %s79
      %85 = dma.hbm_to_vmem [thread:$0]  %s78, 2048, %s80, [#allocation10], 128, 128, 8
    $region25: #{tpu_custom_call.1} parent=1 // pred_fallthru
      _
    // Predicated region
    $region26: #{tpu_custom_call.1} parent=1 // pred_check
      _
    $region27: #{tpu_custom_call.1} parent=1 // pred_check_branch
      %87 = sbr.rel (0) target = $region29
    $region28: #{tpu_custom_call.1} parent=1 // pred_region
      _
    $region29: #{tpu_custom_call.1} parent=1 // pred_fallthru
      _
    // Predicated region
    $region30: #{tpu_custom_call.1} parent=1 // pred_check
      _
    $region31: #{tpu_custom_call.1} parent=1 // pred_check_branch
      %89 = sbr.rel (0) target = $region33
    $region32: #{tpu_custom_call.1} parent=1 // pred_region
      %91 = vsyncadd [#allocation13], 0
      %s92 = sshll.u32 %s7, 4
      %s93 = int_to_ptr.hbm [resolvable:$true] %s92
      %s94 = sshll.u32 [#allocation12], 4
      %s95 = int_to_ptr.vmem [resolvable:$true] %s94
      %100 = dma.hbm_to_vmem [thread:$0]  %s93, 2048, %s95, [#allocation13], 128, 128, 8
    $region33: #{tpu_custom_call.1} parent=1 // pred_fallthru
      _
    // Predicated region
    $region34: #{tpu_custom_call.1} parent=1 // pred_check
      _
    $region35: #{tpu_custom_call.1} parent=1 // pred_check_branch
      %102 = sbr.rel (0) target = $region37
    $region36: #{tpu_custom_call.1} parent=1 // pred_region
      _
    $region37: #{tpu_custom_call.1} parent=1 // pred_fallthru
      _
    // Predicated region
    $region38: #{tpu_custom_call.1} parent=1 // pred_check
      _
    $region39: #{tpu_custom_call.1} parent=1 // pred_check_branch
      %104 = sbr.rel (0) target = $region41
    $region40: #{tpu_custom_call.1} parent=1 // pred_region
      _
    $region41: #{tpu_custom_call.1} parent=1 // pred_fallthru
      _
    // Predicated region
    $region42: #{tpu_custom_call.1} parent=1 // pred_check
      _
    $region43: #{tpu_custom_call.1} parent=1 // pred_check_branch
      %106 = sbr.rel (0) target = $region45
    $region44: #{tpu_custom_call.1} parent=1 // pred_region
      _
    $region45: #{tpu_custom_call.1} parent=1 // pred_fallthru
      _
    // Predicated region
    $region46: #{tpu_custom_call.1} parent=1 // pred_check
      _
    $region47: #{tpu_custom_call.1} parent=1 // pred_check_branch
      %108 = sbr.rel (0) target = $region49
    $region48: #{tpu_custom_call.1} parent=1 // pred_region
      %110 = dma.done [#allocation4], 128
    $region49: #{tpu_custom_call.1} parent=1 // pred_fallthru
      _
    // Predicated region
    $region50: #{tpu_custom_call.1} parent=1 // pred_check
      _
    $region51: #{tpu_custom_call.1} parent=1 // pred_check_branch
      %112 = sbr.rel (0) target = $region53
    $region52: #{tpu_custom_call.1} parent=1 // pred_region
      %114 = dma.done [#allocation7], 128
    $region53: #{tpu_custom_call.1} parent=1 // pred_fallthru
      _
    // Predicated region
    $region54: #{tpu_custom_call.1} parent=1 // pred_check
      _
    $region55: #{tpu_custom_call.1} parent=1 // pred_check_branch
      %116 = sbr.rel (0) target = $region57
    $region56: #{tpu_custom_call.1} parent=1 // pred_region
      %118 = dma.done [#allocation7], 1024
    $region57: #{tpu_custom_call.1} parent=1 // pred_fallthru
      _
    // Predicated region
    $region58: #{tpu_custom_call.1} parent=1 // pred_check
      _
    $region59: #{tpu_custom_call.1} parent=1 // pred_check_branch
      %120 = sbr.rel (0) target = $region61
    $region60: #{tpu_custom_call.1} parent=1 // pred_region
      %122 = dma.done [#allocation10], 256
    $region61: #{tpu_custom_call.1} parent=1 // pred_fallthru
      _
    // Predicated region
    $region62: #{tpu_custom_call.1} parent=1 // pred_check
      _
    $region63: #{tpu_custom_call.1} parent=1 // pred_check_branch
      %124 = sbr.rel (0) target = $region65
    $region64: #{tpu_custom_call.1} parent=1 // pred_region
      %126 = dma.done [#allocation10], 2048
    $region65: #{tpu_custom_call.1} parent=1 // pred_fallthru
      _
    // Predicated region
    $region66: #{tpu_custom_call.1} parent=1 // pred_check
      _
    $region67: #{tpu_custom_call.1} parent=1 // pred_check_branch
      %128 = sbr.rel (0) target = $region69
    $region68: #{tpu_custom_call.1} parent=1 // pred_region
      %130 = dma.done [#allocation13], 2048
    $region69: #{tpu_custom_call.1} parent=1 // pred_fallthru
      _
    %v131 = vld [vmem:[#allocation3] sm:$0xff]
    %v132 = vld [vmem:[#allocation8] sm:$0xff]
    %v133 = vld [vmem:[#allocation8 + $0x8] sm:$0xff]
    %v134 = vld [vmem:[#allocation8 + $0x10] sm:$0xff]
    %v135 = vld [vmem:[#allocation8 + $0x18] sm:$0xff]
    %v136 = vld [vmem:[#allocation8 + $0x20] sm:$0xff]
    %v137 = vld [vmem:[#allocation8 + $0x28] sm:$0xff]
    %v138 = vld [vmem:[#allocation8 + $0x30] sm:$0xff]
    %v139 = vld [vmem:[#allocation8 + $0x38] sm:$0xff]
    %v140 = vld [vmem:[#allocation6] sm:$0xff]
    %v141 = vld [vmem:[#allocation9] sm:$0xff]
    %v142 = vld [vmem:[#allocation9 + $0x8] sm:$0xff]
    %vm143 = vcmask 130048
    %v145 = vsel %vm143, %v140, 0
    %147 = vmatpush.msra.mxu0 0.0
    %148 = vmatpush.msra.mxu0 0.0
    %149 = vmatpush.msra.mxu0 0.0
    %150 = vmatpush.msra.mxu0 0.0
    %151 = vmatpush.msra.mxu0 0.0
    %152 = vmatpush.msra.mxu0 0.0
    %153 = vmatpush.msra.mxu0 0.0
    %154 = vmatpush.msra.mxu0 0.0
    %155 = vmatpush.msra.mxu0 0.0
    %156 = vmatpush.msra.mxu0 0.0
    %157 = vmatpush.msra.mxu0 0.0
    %158 = vmatpush.msra.mxu0 0.0
    %159 = vmatpush.msra.mxu0 0.0
    %160 = vmatpush.msra.mxu0 0.0
    %161 = vmatpush.msra.mxu0 %v142
    %162 = vmatpush.msra.mxu0 %v141
    %163 = vmatmul.f32.gmra.mxu0 %v145
    %v164 = vpop.f32.mrf.mxu0
    %v165 = vadd.f32 0.0, %v164
    %166 = vdwg.mxu0
    %vm167 = vcmask 523264
    %v169 = vsel %vm167, %v131, 0
    %171 = vmatpush.msra.mxu0 0.0
    %172 = vmatpush.msra.mxu0 0.0
    %173 = vmatpush.msra.mxu0 0.0
    %174 = vmatpush.msra.mxu0 0.0
    %175 = vmatpush.msra.mxu0 0.0
    %176 = vmatpush.msra.mxu0 0.0
    %177 = vmatpush.msra.mxu0 0.0
    %178 = vmatpush.msra.mxu0 0.0
    %179 = vmatpush.msra.mxu0 %v139
    %180 = vmatpush.msra.mxu0 %v138
    %181 = vmatpush.msra.mxu0 %v137
    %182 = vmatpush.msra.mxu0 %v136
    %183 = vmatpush.msra.mxu0 %v135
    %184 = vmatpush.msra.mxu0 %v134
    %185 = vmatpush.msra.mxu0 %v133
    %186 = vmatpush.msra.mxu0 %v132
    %187 = vmatmul.f32.gmra.mxu0 %v169
    %v188 = vpop.f32.mrf.mxu0
    %v189 = vadd.f32 %v165, %v188
    %190 = vdwg.mxu0
    %v191 = vld [vmem:[%s4] sm:$0x1]
    %v193 = vperm.slane %v191, 0
    %v195 = vadd.f32 %v189, %v193
    %v196 = vmax.f32 %v195, 0.0
    %v197 = vld [vmem:[#allocation11] sm:$0xff]
    %v198 = vld [vmem:[#allocation11 + $0x8] sm:$0xff]
    %v199 = vld [vmem:[#allocation11 + $0x10] sm:$0xff]
    %v200 = vld [vmem:[#allocation11 + $0x18] sm:$0xff]
    %v201 = vld [vmem:[#allocation11 + $0x20] sm:$0xff]
    %v202 = vld [vmem:[#allocation11 + $0x28] sm:$0xff]
    %v203 = vld [vmem:[#allocation11 + $0x30] sm:$0xff]
    %v204 = vld [vmem:[#allocation11 + $0x38] sm:$0xff]
    %v205 = vld [vmem:[#allocation11 + $0x40] sm:$0xff]
    %v206 = vld [vmem:[#allocation11 + $0x48] sm:$0xff]
    %v207 = vld [vmem:[#allocation11 + $0x50] sm:$0xff]
    %v208 = vld [vmem:[#allocation11 + $0x58] sm:$0xff]
    %v209 = vld [vmem:[#allocation11 + $0x60] sm:$0xff]
    %v210 = vld [vmem:[#allocation11 + $0x68] sm:$0xff]
    %v211 = vld [vmem:[#allocation11 + $0x70] sm:$0xff]
    %v212 = vld [vmem:[#allocation11 + $0x78] sm:$0xff]
    %v213 = vld [vmem:[%s6] sm:$0x1]
    %v215 = vperm.slane %v213, 0
    %217 = vmatpush.msra.mxu0 %v212
    %218 = vmatpush.msra.mxu0 %v211
    %219 = vmatpush.msra.mxu0 %v210
    %220 = vmatpush.msra.mxu0 %v209
    %221 = vmatpush.msra.mxu0 %v208
    %222 = vmatpush.msra.mxu0 %v207
    %223 = vmatpush.msra.mxu0 %v206
    %224 = vmatpush.msra.mxu0 %v205
    %225 = vmatpush.msra.mxu0 %v204
    %226 = vmatpush.msra.mxu0 %v203
    %227 = vmatpush.msra.mxu0 %v202
    %228 = vmatpush.msra.mxu0 %v201
    %229 = vmatpush.msra.mxu0 %v200
    %230 = vmatpush.msra.mxu0 %v199
    %231 = vmatpush.msra.mxu0 %v198
    %232 = vmatpush.msra.mxu0 %v197
    %233 = vmatmul.f32.gmra.mxu0 %v196
    %v234 = vpop.f32.mrf.mxu0
    %v235 = vadd.f32 %v215, %v234
    %236 = vdwg.mxu0
    %v237 = vmax.f32 %v235, 0.0
    %v238 = vld [vmem:[#allocation12] sm:$0xff]
    %v239 = vld [vmem:[#allocation12 + $0x8] sm:$0xff]
    %v240 = vld [vmem:[#allocation12 + $0x10] sm:$0xff]
    %v241 = vld [vmem:[#allocation12 + $0x18] sm:$0xff]
    %v242 = vld [vmem:[#allocation12 + $0x20] sm:$0xff]
    %v243 = vld [vmem:[#allocation12 + $0x28] sm:$0xff]
    %v244 = vld [vmem:[#allocation12 + $0x30] sm:$0xff]
    %v245 = vld [vmem:[#allocation12 + $0x38] sm:$0xff]
    %v246 = vld [vmem:[#allocation12 + $0x40] sm:$0xff]
    %v247 = vld [vmem:[#allocation12 + $0x48] sm:$0xff]
    %v248 = vld [vmem:[#allocation12 + $0x50] sm:$0xff]
    %v249 = vld [vmem:[#allocation12 + $0x58] sm:$0xff]
    %v250 = vld [vmem:[#allocation12 + $0x60] sm:$0xff]
    %v251 = vld [vmem:[#allocation12 + $0x68] sm:$0xff]
    %v252 = vld [vmem:[#allocation12 + $0x70] sm:$0xff]
    %v253 = vld [vmem:[#allocation12 + $0x78] sm:$0xff]
    %v254 = vld [vmem:[%s8] sm:$0x1]
    %v256 = vperm.slane %v254, 0
    %258 = vmatpush.msra.mxu0 %v253
    %259 = vmatpush.msra.mxu0 %v252
    %260 = vmatpush.msra.mxu0 %v251
    %261 = vmatpush.msra.mxu0 %v250
    %262 = vmatpush.msra.mxu0 %v249
    %263 = vmatpush.msra.mxu0 %v248
    %264 = vmatpush.msra.mxu0 %v247
    %265 = vmatpush.msra.mxu0 %v246
    %266 = vmatpush.msra.mxu0 %v245
    %267 = vmatpush.msra.mxu0 %v244
    %268 = vmatpush.msra.mxu0 %v243
    %269 = vmatpush.msra.mxu0 %v242
    %270 = vmatpush.msra.mxu0 %v241
    %271 = vmatpush.msra.mxu0 %v240
    %272 = vmatpush.msra.mxu0 %v239
    %273 = vmatpush.msra.mxu0 %v238
    %274 = vmatmul.f32.gmra.mxu0 %v237
    %v275 = vpop.f32.mrf.mxu0
    %v276 = vadd.f32 %v256, %v275
    %277 = vdwg.mxu0
    %v278 = vmax.f32 %v276, 0.0
    %v279 = vld [vmem:[%s9] sm:$0x1]
    %v280 = vld [vmem:[#allocation2] sm:$0x1]
    %282 = vset.pattern.permute.xlu0 0
    %283 = vperm.xlu0 %282, %v280
    %v284 = vpop.permute.xlu0 %283
    %v286 = vperm.slane %v284, 0
    %287 = vmatpush.xpose.msra.mxu0 0.0
    %288 = vmatpush.xpose.msra.mxu0 0.0
    %289 = vmatpush.xpose.msra.mxu0 0.0
    %290 = vmatpush.xpose.msra.mxu0 0.0
    %291 = vmatpush.xpose.msra.mxu0 0.0
    %292 = vmatpush.xpose.msra.mxu0 0.0
    %293 = vmatpush.xpose.msra.mxu0 0.0
    %294 = vmatpush.xpose.msra.mxu0 0.0
    %295 = vmatpush.xpose.msra.mxu0 0.0
    %296 = vmatpush.xpose.msra.mxu0 0.0
    %297 = vmatpush.xpose.msra.mxu0 0.0
    %298 = vmatpush.xpose.msra.mxu0 0.0
    %299 = vmatpush.xpose.msra.mxu0 0.0
    %300 = vmatpush.xpose.msra.mxu0 0.0
    %301 = vmatpush.xpose.msra.mxu0 0.0
    %302 = vmatpush.xpose.msra.mxu0 %v278
    %303 = vmatmul.f32.gmra.mxu0 %v279
    %v304 = vpop.f32.mrf.mxu0
    %v305 = vadd.f32 %v286, %v304
    %306 = vdwg.mxu0
    %vm307 = vcmask 57344
    %308 = vst.msk [vmem:[#allocation14] sm:$0x1] %vm307, %v305
    // Predicated region
    $region70: #{tpu_custom_call.1} parent=1 // pred_check
      _
    $region71: #{tpu_custom_call.1} parent=1 // pred_check_branch
      %310 = sbr.rel (0) target = $region73
    $region72: #{tpu_custom_call.1} parent=1 // pred_region
      %312 = vsyncadd [#allocation5], 0
      %s314 = sshll.u32 [#allocation14], 4
      %s315 = int_to_ptr.vmem [resolvable:$true] %s314
      %s316 = sshll.u32 %s11, 4
      %s317 = int_to_ptr.hbm [resolvable:$true] %s316
      %319 = dma.vmem_to_hbm [thread:$0]  %s315, 16, %s317, [#allocation5]
    $region73: #{tpu_custom_call.1} parent=1 // pred_fallthru
      _
    // Predicated region
    $region74: #{tpu_custom_call.1} parent=1 // pred_check
      _
    $region75: #{tpu_custom_call.1} parent=1 // pred_check_branch
      %321 = sbr.rel (0) target = $region77
    $region76: #{tpu_custom_call.1} parent=1 // pred_region
      %323 = dma.done [#allocation5], 16
    $region77: #{tpu_custom_call.1} parent=1 // pred_fallthru
      _
    %324 = vsyncpa [#allocation4], 1
    %325 = vsyncpa [#allocation7], 1
    %326 = vsyncpa [#allocation10], 1
    %327 = vsyncpa [#allocation13], 1
    %328 = vsyncpa [#allocation5], 1

</llo_original>
